<compile_context>
chip_gen: v7x
topology: tpu7x:2x2x1
jax: 0.10.0
libtpu: 0.0.40
codegen_flags: <defaults>
</compile_context>

<pallas_src>
import functools

import jax
import jax.numpy as jnp
from jax.experimental import pallas as pl
from jax.experimental.pallas import tpu as pltpu


def _round_up(x: int, m: int) -> int:
    return (x + m - 1) // m * m


def _sublane_multiple(dtype) -> int:
    # f32 -> 8, bf16 -> 16, int8/fp8 -> 32 (sub-32-bit dtypes pack along sublanes).
    return max(8, 32 // jnp.dtype(dtype).itemsize)


def _clamp_lane_tiles(in_features: int, out_features: int, tn: int, tk: int,
                      expect_small_batch: bool):
    n_lane = _round_up(out_features, 128)
    k_lane = _round_up(in_features, 128)
    tn = max(128, min(tn, n_lane))
    if n_lane >= 256:
        # Full-width MXU passes on v6e/v7x (2x256^2): keep tn a multiple of 256.
        tn = _round_up(tn, 256)
    else:
        tn = _round_up(tn, 128)
    tk = max(128, min(tk, k_lane))
    tk = _round_up(tk, 128)
    if expect_small_batch and n_lane >= 2 * 256 and tn >= n_lane:
        # Small batch => single M tile. Keep >= 2 N tiles so both v7x TensorCores
        # (megacore, "parallel" N axis) get work instead of idling half the chip.
        tn = _round_up((n_lane + 1) // 2, 256)
    return tn, tk


def _linear_relu_kernel(x_ref, w_ref, b_ref, o_ref, acc_ref=None, *, mxu_dtype=None):
    """Computes one (i, j) output tile; K (reduction) is the innermost grid axis."""
    k = pl.program_id(2)
    nk = pl.num_programs(2)

    x = x_ref[...]
    w = w_ref[...]
    if mxu_dtype is not None:
        x = x.astype(mxu_dtype)
        w = w.astype(mxu_dtype)

    part = jnp.dot(x, w, preferred_element_type=jnp.float32)

    # f32 output: accumulate directly in the resident output block (saves the
    # tm*tn*4 B scratch + a tile copy). Narrower outputs use the f32 scratch.
    acc = o_ref if acc_ref is None else acc_ref

    @pl.when(k == 0)
    def _init():
        acc[...] = part

    @pl.when(k > 0)
    def _accumulate():
        acc[...] += part

    @pl.when(k == nk - 1)
    def _finalize():
        y = acc[...].astype(jnp.float32) + b_ref[...].astype(jnp.float32)
        o_ref[...] = jnp.maximum(y, 0.0).astype(o_ref.dtype)


def prepare_linear_params(weight, bias, *, tn: int = 1024, tk: int = 512,
                          mxu_dtype=None, expect_small_batch: bool = False):
    """One-time parameter prep (outside the per-call hot path).

    weight: (out_features, in_features)  -- torch nn.Linear layout
    bias:   (out_features,)

    Transposes to (in, out), zero-pads to lane/tile multiples ONCE, and
    optionally casts the weight to a narrower MXU dtype (e.g. jnp.bfloat16).
    """
    out_features, in_features = weight.shape
    tn, tk = _clamp_lane_tiles(in_features, out_features, tn, tk, expect_small_batch)
    Kp = _round_up(in_features, tk)
    Np = _round_up(out_features, tn)

    weight_t = weight.T  # (in, out): kernel computes x @ W_t on the MXU
    if weight_t.shape != (Kp, Np):
        weight_t = jnp.pad(weight_t, ((0, Kp - in_features), (0, Np - out_features)))
    if mxu_dtype is not None:
        weight_t = weight_t.astype(mxu_dtype)

    bias2d = bias.reshape(1, out_features)
    if Np != out_features:
        bias2d = jnp.pad(bias2d, ((0, 0), (0, Np - out_features)))

    return dict(weight_t=weight_t, bias=bias2d,
                in_features=in_features, out_features=out_features,
                tn=tn, tk=tk, mxu_dtype=mxu_dtype)


@functools.partial(
    jax.jit,
    static_argnames=("out_features", "tm", "tn", "tk", "mxu_dtype", "dropout"))
def _linear_layer_impl(x, weight_t, bias, *, out_features, tm, tn, tk,
                       mxu_dtype, dropout):
    # TODO(synk): dropout > 0 (training-mode nn.Dropout) not implemented; module
    # default is dropout=0.0 so the forward pass here is deterministic.
    assert dropout == 0.0

    out_dtype = x.dtype
    lead_shape = x.shape[:-1]
    K = x.shape[-1]
    x2 = x.reshape(-1, K)
    B = x2.shape[0]

    Kp, Np = weight_t.shape
    N = out_features

    if mxu_dtype is not None:
        x2 = x2.astype(mxu_dtype)

    # Dtype-aware sublane rounding for the M tile (8 f32 / 16 bf16 / 32 int8).
    sub = _sublane_multiple(x2.dtype)
    tm = _round_up(min(tm, _round_up(B, sub)), sub)
    Mp = _round_up(B, tm)

    # Zero-pad x: K padding is required for a correct reduction; padded M rows
    # are garbage-free zeros and are sliced off after the kernel.
    if x2.shape != (Mp, Kp):
        x2 = jnp.pad(x2, ((0, Mp - B), (0, Kp - K)))

    m_tiles, n_tiles, k_tiles = Mp // tm, Np // tn, Kp // tk
    grid = (m_tiles, n_tiles, k_tiles)

    use_scratch = jnp.dtype(out_dtype) != jnp.dtype(jnp.float32)
    scratch_shapes = [pltpu.VMEM((tm, tn), jnp.float32)] if use_scratch else []

    # Weight-streaming regime (single M tile, e.g. small-batch inference):
    # deepen the W_t prefetch pipeline to hide DMA issue latency.
    w_map = lambda i, j, k: (k, j)
    w_spec = pl.BlockSpec((tk, tn), w_map)
    w_buffers = 2
    if m_tiles == 1 and n_tiles * k_tiles >= 3:
        try:
            w_spec = pl.BlockSpec((tk, tn), w_map, pipeline_mode=pl.Buffered(3))
            w_buffers = 3
        except TypeError:  # older BlockSpec without pipeline_mode
            w_spec = pl.BlockSpec((tk, tn), w_map)
            w_buffers = 2

    x_item = jnp.dtype(x2.dtype).itemsize
    w_item = jnp.dtype(weight_t.dtype).itemsize
    o_item = jnp.dtype(out_dtype).itemsize

    # Double-buffered tile footprint + headroom; raise the scoped VMEM limit so
    # big tiles actually fit (scoped defaults: 16 MiB v5e / 32 MiB v6e,v7x).
    live = (2 * tm * tk * x_item + w_buffers * tk * tn * w_item
            + 2 * tn * 4 + 2 * tm * tn * o_item
            + (tm * tn * 4 if use_scratch else 0))
    vmem_limit = int(min(max(live * 5 // 4 + (4 << 20), 32 << 20), 96 << 20))

    # bytes_accessed accounts for re-streaming: x is read n_tiles times and W_t
    # is read m_tiles times across the grid.
    cost = pl.CostEstimate(
        flops=2 * Mp * Kp * Np,
        transcendentals=0,
        bytes_accessed=(Mp * Kp * x_item) * n_tiles
        + (Kp * Np * w_item) * m_tiles
        + Np * 4
        + Mp * Np * o_item,
    )

    kernel = functools.partial(_linear_relu_kernel, mxu_dtype=mxu_dtype)

    out_padded = pl.pallas_call(
        kernel,
        out_shape=jax.ShapeDtypeStruct((Mp, Np), out_dtype),
        grid_spec=pltpu.PrefetchScalarGridSpec(
            num_scalar_prefetch=0,
            grid=grid,
            in_specs=[
                pl.BlockSpec((tm, tk), lambda i, j, k: (i, k)),  # x tile
                w_spec,                                          # W_t tile
                pl.BlockSpec((1, tn), lambda i, j, k: (0, j)),   # bias tile
            ],
            out_specs=pl.BlockSpec((tm, tn), lambda i, j, k: (i, j)),
            scratch_shapes=scratch_shapes,
        ),
        compiler_params=pltpu.CompilerParams(
            dimension_semantics=("parallel", "parallel", "arbitrary"),
            vmem_limit_bytes=vmem_limit,
        ),
        cost_estimate=cost,
    )(x2, weight_t, bias)

    out = out_padded[:B, :N]
    return out.reshape(*lead_shape, N)


def linear_layer(x, params, *, tm: int = 512, dropout: float = 0.0):
    """Forward pass of LinearLayer: relu(x @ W.T + b), params from prepare_linear_params."""
    return _linear_layer_impl(
        x, params["weight_t"], params["bias"],
        out_features=params["out_features"],
        tm=tm, tn=params["tn"], tk=params["tk"],
        mxu_dtype=params["mxu_dtype"], dropout=dropout)


if __name__ == "__main__":
    key = jax.random.PRNGKey(0)
    k_x, k_w, k_b = jax.random.split(key, 3)

    B = 8
    in_features = 32
    out_features = 64

    # Deterministic parameter init mimicking nn.Linear's uniform(-1/sqrt(in), 1/sqrt(in)).
    bound = 1.0 / jnp.sqrt(jnp.float32(in_features))
    weight = jax.random.uniform(
        k_w, (out_features, in_features), jnp.float32, -bound, bound
    )  # torch layout (out, in)
    bias = jax.random.uniform(k_b, (out_features,), jnp.float32, -bound, bound)
    x = jax.random.normal(k_x, (B, in_features), jnp.float32)

    ref = jnp.maximum(x @ weight.T + bias, 0.0)

    # f32 path (exact MXU-dtype preserving).
    params_f32 = prepare_linear_params(weight, bias)
    out = jax.block_until_ready(linear_layer(x, params_f32))
    assert out.shape == (B, out_features)
    assert jnp.allclose(out, ref, atol=1e-5, rtol=1e-5)

    # bf16-fed MXU path (f32 accumulation), looser tolerance; exercises the
    # small-batch / weight-streaming tiling configuration as well.
    params_bf16 = prepare_linear_params(weight, bias, mxu_dtype=jnp.bfloat16,
                                        expect_small_batch=True)
    out_bf16 = jax.block_until_ready(linear_layer(x, params_bf16))
    assert out_bf16.shape == (B, out_features)
    assert jnp.allclose(out_bf16, ref, atol=5e-2, rtol=5e-2)

    print("KERNEL_OK")
</pallas_src>

<mosaic_0001>
module attributes {stable_mosaic.version = 11 : i64} {
  func.func @_linear_relu_kernel(%arg0: i32, %arg1: i32, %arg2: i32, %arg3: memref<8x128xf32, #tpu.memory_space<vmem>>, %arg4: memref<128x128xf32, #tpu.memory_space<vmem>>, %arg5: memref<1x128xf32, #tpu.memory_space<vmem>>, %arg6: memref<8x128xf32, #tpu.memory_space<vmem>>) attributes {dimension_semantics = [#tpu.dimension_semantics<parallel>, #tpu.dimension_semantics<parallel>, #tpu.dimension_semantics<arbitrary>], iteration_bounds = array<i64: 1, 1, 1>, scalar_prefetch = 0 : i64, scratch_operands = 0 : i64, tpu.core_type = #tpu.core_type<tc>, window_params = [{transform_indices = @transform_0, window_bounds = array<i64: 8, 128>}, {transform_indices = @transform_1, window_bounds = array<i64: 128, 128>}, {transform_indices = @transform_2, window_bounds = array<i64: 1, 128>}, {transform_indices = @transform_3, window_bounds = array<i64: 8, 128>}]} {
    %c0 = arith.constant 0 : index
    %c0_0 = arith.constant 0 : index
    %0 = vector.load %arg3[%c0, %c0_0] : memref<8x128xf32, #tpu.memory_space<vmem>>, vector<8x128xf32>
    %c0_1 = arith.constant 0 : index
    %c0_2 = arith.constant 0 : index
    %1 = vector.load %arg4[%c0_1, %c0_2] : memref<128x128xf32, #tpu.memory_space<vmem>>, vector<128x128xf32>
    %cst = arith.constant dense<0.000000e+00> : vector<8x128xf32>
    %2 = tpu.matmul %0, %1, %cst {dimension_numbers = #tpu.dot_dimension_numbers<[1], [0], [0], [1], [0, 0, 1, 1], [], []>} : vector<8x128xf32>, vector<128x128xf32>, vector<8x128xf32> -> vector<8x128xf32>
    %c0_i32 = arith.constant 0 : i32
    %3 = arith.cmpi eq, %arg2, %c0_i32 : i32
    %4 = arith.extui %3 : i1 to i32
    %c0_i32_3 = arith.constant 0 : i32
    %5 = arith.cmpi ne, %4, %c0_i32_3 : i32
    scf.if %5 {
      %c0_8 = arith.constant 0 : index
      %c0_9 = arith.constant 0 : index
      %12 = vector.load %arg6[%c0_8, %c0_9] : memref<8x128xf32, #tpu.memory_space<vmem>>, vector<8x128xf32>
      tpu.vector_store %arg6[%c0_8, %c0_9], %2 {strides = array<i32>} : memref<8x128xf32, #tpu.memory_space<vmem>>, vector<8x128xf32>,
    } else {
    }
    %c0_i32_4 = arith.constant 0 : i32
    %6 = arith.cmpi sgt, %arg2, %c0_i32_4 : i32
    %7 = arith.extui %6 : i1 to i32
    %c0_i32_5 = arith.constant 0 : i32
    %8 = arith.cmpi ne, %7, %c0_i32_5 : i32
    scf.if %8 {
      %c0_8 = arith.constant 0 : index
      %c0_9 = arith.constant 0 : index
      %12 = vector.load %arg6[%c0_8, %c0_9] : memref<8x128xf32, #tpu.memory_space<vmem>>, vector<8x128xf32>
      %13 = arith.addf %12, %2 : vector<8x128xf32>
      %c0_10 = arith.constant 0 : index
      %c0_11 = arith.constant 0 : index
      %14 = vector.load %arg6[%c0_10, %c0_11] : memref<8x128xf32, #tpu.memory_space<vmem>>, vector<8x128xf32>
      tpu.vector_store %arg6[%c0_10, %c0_11], %13 {strides = array<i32>} : memref<8x128xf32, #tpu.memory_space<vmem>>, vector<8x128xf32>,
    } else {
    }
    %c0_i32_6 = arith.constant 0 : i32
    %9 = arith.cmpi eq, %arg2, %c0_i32_6 : i32
    %10 = arith.extui %9 : i1 to i32
    %c0_i32_7 = arith.constant 0 : i32
    %11 = arith.cmpi ne, %10, %c0_i32_7 : i32
    scf.if %11 {
      %c0_8 = arith.constant 0 : index
      %c0_9 = arith.constant 0 : index
      %12 = vector.load %arg6[%c0_8, %c0_9] : memref<8x128xf32, #tpu.memory_space<vmem>>, vector<8x128xf32>
      %c0_10 = arith.constant 0 : index
      %c0_11 = arith.constant 0 : index
      %13 = vector.load %arg5[%c0_10, %c0_11] : memref<1x128xf32, #tpu.memory_space<vmem>>, vector<1x128xf32>
      %14 = vector.broadcast %13 : vector<1x128xf32> to vector<8x128xf32>
      %15 = arith.addf %12, %14 : vector<8x128xf32>
      %cst_12 = arith.constant 0.000000e+00 : f32
      %16 = vector.broadcast %cst_12 : f32 to vector<8x128xf32>
      %17 = arith.maximumf %15, %16 : vector<8x128xf32>
      %c0_13 = arith.constant 0 : index
      %c0_14 = arith.constant 0 : index
      %18 = vector.load %arg6[%c0_13, %c0_14] : memref<8x128xf32, #tpu.memory_space<vmem>>, vector<8x128xf32>
      tpu.vector_store %arg6[%c0_13, %c0_14], %17 {strides = array<i32>} : memref<8x128xf32, #tpu.memory_space<vmem>>, vector<8x128xf32>,
    } else {
    }
    return
  }
  func.func @transform_0(%arg0: i32, %arg1: i32, %arg2: i32) -> (i32, i32) {
    %c0_i32 = arith.constant 0 : i32
    return %arg0, %arg2 : i32, i32
  }
  func.func @transform_1(%arg0: i32, %arg1: i32, %arg2: i32) -> (i32, i32) {
    %c0_i32 = arith.constant 0 : i32
    return %arg2, %arg1 : i32, i32
  }
  func.func @transform_2(%arg0: i32, %arg1: i32, %arg2: i32) -> (i32, i32) {
    %c0_i32 = arith.constant 0 : i32
    %c0_i32_0 = arith.constant 0 : i32
    return %c0_i32, %arg1 : i32, i32
  }
  func.func @transform_3(%arg0: i32, %arg1: i32, %arg2: i32) -> (i32, i32) {
    %c0_i32 = arith.constant 0 : i32
    return %arg0, %arg1 : i32, i32
  }
}

</mosaic_0001>

<llo_original>
// kernel: _linear_layer_impl.1
$region0: #{_linear_layer_impl.1}
  #allocation0 [shape = 'u32[]', space=smem, size = 0x4, offset = 0x4, fixed_abs, tag = 'smem constant byte address 0x4 - core index']
  #allocation1 [shape = 'u32[144,128]{1,0:T(1,128)}', space=vmem, size = 0x12000, scoped, tag = 'internal scratch']
  %s0 = inlined_call_operand.vmem [shape: f32[8,128], index: 0, kind: input, shape index: {}]
  %s1 = inlined_call_operand.hbm [shape: f32[128,128], index: 1, kind: input, shape index: {}]
  %s2 = inlined_call_operand.vmem [shape: f32[1,128], index: 2, kind: input, shape index: {}]
  %s3 = inlined_call_operand.hbm [shape: f32[8,128], index: 3, kind: output, shape index: {}]
  %s4 = sld [smem:[#allocation0]]
  $region38: #{_linear_layer_impl.1} parent=0
    _
  %s6 = ssub.s32 1, %s4
  %s7 = scalar_select 0, %s6, %s4
  $region1: #{_linear_layer_impl.1} parent=0
    #allocation2 [shape = 'u8[65536]{0}', space=vmem, size = 0x10000, scoped, tag = 'input window, operand 1, single buffered']
    #allocation3 [shape = 's32[1]{0}', space=sflag, size = 0x4, scoped, tag = 'scoped memory for _linear_layer_impl.1']
    #allocation4 [shape = 's32[1]{0}', space=sflag, size = 0x4, scoped, tag = 'scoped memory for _linear_layer_impl.1']
    #allocation5 [shape = 'u8[4096]{0}', space=vmem, size = 0x1000, scoped, tag = 'output window, operand 0, single buffered']
    %8 = vsyncpa [#allocation3], 0
    %9 = vsyncpa [#allocation4], 0
    // Predicated region
    $region2: #{_linear_layer_impl.1} parent=1 // pred_check
      _
    $region3: #{_linear_layer_impl.1} parent=1 // pred_check_branch
      %11 = sbr.rel (0) target = $region5
    $region4: #{_linear_layer_impl.1} parent=1 // pred_region
      _
    $region5: #{_linear_layer_impl.1} parent=1 // pred_fallthru
      _
    // Predicated region
    $region6: #{_linear_layer_impl.1} parent=1 // pred_check
      _
    $region7: #{_linear_layer_impl.1} parent=1 // pred_check_branch
      %13 = sbr.rel (0) target = $region9
    $region8: #{_linear_layer_impl.1} parent=1 // pred_region
      %s15 = ssub.s32 2048, 2048
      %16 = vsyncadd [#allocation3], %s15
      %s17 = sshll.u32 [#allocation2], 4
      %s18 = int_to_ptr.vmem [resolvable:$true] %s17
      %23 = dma.hbm_to_vmem [thread:$0]  %s1, 2048, %s18, [#allocation3], 128, 128, 8
    $region9: #{_linear_layer_impl.1} parent=1 // pred_fallthru
      _
    // Predicated region
    $region10: #{_linear_layer_impl.1} parent=1 // pred_check
      _
    $region11: #{_linear_layer_impl.1} parent=1 // pred_check_branch
      %25 = sbr.rel (0) target = $region13
    $region12: #{_linear_layer_impl.1} parent=1 // pred_region
      _
    $region13: #{_linear_layer_impl.1} parent=1 // pred_fallthru
      _
    // Predicated region
    $region14: #{_linear_layer_impl.1} parent=1 // pred_check
      _
    $region15: #{_linear_layer_impl.1} parent=1 // pred_check_branch
      %27 = sbr.rel (0) target = $region17
    $region16: #{_linear_layer_impl.1} parent=1 // pred_region
      %28 = dma.done [#allocation3], 2048
    $region17: #{_linear_layer_impl.1} parent=1 // pred_fallthru
      _
    %v29 = vld [vmem:[%s0] sm:$0xff]
    %v30 = vld [vmem:[#allocation2] sm:$0xff]
    %v31 = vld [vmem:[#allocation2 + $0x8] sm:$0xff]
    %v32 = vld [vmem:[#allocation2 + $0x10] sm:$0xff]
    %v33 = vld [vmem:[#allocation2 + $0x18] sm:$0xff]
    %v34 = vld [vmem:[#allocation2 + $0x20] sm:$0xff]
    %v35 = vld [vmem:[#allocation2 + $0x28] sm:$0xff]
    %v36 = vld [vmem:[#allocation2 + $0x30] sm:$0xff]
    %v37 = vld [vmem:[#allocation2 + $0x38] sm:$0xff]
    %v38 = vld [vmem:[#allocation2 + $0x40] sm:$0xff]
    %v39 = vld [vmem:[#allocation2 + $0x48] sm:$0xff]
    %v40 = vld [vmem:[#allocation2 + $0x50] sm:$0xff]
    %v41 = vld [vmem:[#allocation2 + $0x58] sm:$0xff]
    %v42 = vld [vmem:[#allocation2 + $0x60] sm:$0xff]
    %v43 = vld [vmem:[#allocation2 + $0x68] sm:$0xff]
    %v44 = vld [vmem:[#allocation2 + $0x70] sm:$0xff]
    %v45 = vld [vmem:[#allocation2 + $0x78] sm:$0xff]
    %46 = vmatprep.subr.mxu0 0.0
    %47 = vmatpush1.msra.mxu0 %v30
    %48 = vmatprep.subr.mxu0 0.0
    %49 = vmatpush1.msra.mxu0 %v31
    %50 = vmatprep.subr.mxu0 0.0
    %51 = vmatpush1.msra.mxu0 %v32
    %52 = vmatprep.subr.mxu0 0.0
    %53 = vmatpush1.msra.mxu0 %v33
    %54 = vmatprep.subr.mxu0 0.0
    %55 = vmatpush1.msra.mxu0 %v34
    %56 = vmatprep.subr.mxu0 0.0
    %57 = vmatpush1.msra.mxu0 %v35
    %58 = vmatprep.subr.mxu0 0.0
    %59 = vmatpush1.msra.mxu0 %v36
    %60 = vmatprep.subr.mxu0 0.0
    %61 = vmatpush1.msra.mxu0 %v37
    %62 = vmatprep.subr.mxu0 0.0
    %63 = vmatpush1.msra.mxu0 %v38
    %64 = vmatprep.subr.mxu0 0.0
    %65 = vmatpush1.msra.mxu0 %v39
    %66 = vmatprep.subr.mxu0 0.0
    %67 = vmatpush1.msra.mxu0 %v40
    %68 = vmatprep.subr.mxu0 0.0
    %69 = vmatpush1.msra.mxu0 %v41
    %70 = vmatprep.subr.mxu0 0.0
    %71 = vmatpush1.msra.mxu0 %v42
    %72 = vmatprep.subr.mxu0 0.0
    %73 = vmatpush1.msra.mxu0 %v43
    %74 = vmatprep.subr.mxu0 0.0
    %75 = vmatpush1.msra.mxu0 %v44
    %76 = vmatprep.subr.mxu0 0.0
    %77 = vmatpush1.msra.mxu0 %v45
    %78 = vmatprep.subr.mxu0 0.0
    %79 = vmatpush1.msra.mxu0 0.0
    %80 = vmatprep.subr.mxu0 0.0
    %81 = vmatpush1.msra.mxu0 0.0
    %82 = vmatprep.subr.mxu0 0.0
    %83 = vmatpush1.msra.mxu0 0.0
    %84 = vmatprep.subr.mxu0 0.0
    %85 = vmatpush1.msra.mxu0 0.0
    %86 = vmatprep.subr.mxu0 0.0
    %87 = vmatpush1.msra.mxu0 0.0
    %88 = vmatprep.subr.mxu0 0.0
    %89 = vmatpush1.msra.mxu0 0.0
    %90 = vmatprep.subr.mxu0 0.0
    %91 = vmatpush1.msra.mxu0 0.0
    %92 = vmatprep.subr.mxu0 0.0
    %93 = vmatpush1.msra.mxu0 0.0
    %94 = vmatprep.subr.mxu0 0.0
    %95 = vmatpush1.msra.mxu0 0.0
    %96 = vmatprep.subr.mxu0 0.0
    %97 = vmatpush1.msra.mxu0 0.0
    %98 = vmatprep.subr.mxu0 0.0
    %99 = vmatpush1.msra.mxu0 0.0
    %100 = vmatprep.subr.mxu0 0.0
    %101 = vmatpush1.msra.mxu0 0.0
    %102 = vmatprep.subr.mxu0 0.0
    %103 = vmatpush1.msra.mxu0 0.0
    %104 = vmatprep.subr.mxu0 0.0
    %105 = vmatpush1.msra.mxu0 0.0
    %106 = vmatprep.subr.mxu0 0.0
    %107 = vmatpush1.msra.mxu0 0.0
    %108 = vmatprep.subr.mxu0 0.0
    %109 = vmatpush1.msra.mxu0 0.0
    %110 = vmatprep.mubr.f32.mxu0 0.0
    %111 = vmatmul.mubr.f32.gmra.mrb[0].mxu0 %v29
    %v112 = vpop.f32.mrb[0].mxu0
    %v113 = vadd.f32 0.0, %v112
    %v114 = vpop.f32.mrb[0].mxu0
    %115 = vdwg.mxu0
    %p116 = scmp.eq.s32.totalorder 0, 0
    // Predicated region
    $region18: #{_linear_layer_impl.1} parent=1 // pred_check
      %p117 = pneg %p116
    $region19: #{_linear_layer_impl.1} parent=1 // pred_check_branch
      %119 = sbr.rel (%p117) target = $region21
    $region20: #{_linear_layer_impl.1} parent=1 // pred_region
      %120 = vst [vmem:[#allocation5] sm:$0xff] %v113
    $region21: #{_linear_layer_impl.1} parent=1 // pred_fallthru
      _
    %p121 = scmp.gt.s32.totalorder 0, 0
    // Predicated region
    $region22: #{_linear_layer_impl.1} parent=1 // pred_check
      %p122 = pneg %p121
    $region23: #{_linear_layer_impl.1} parent=1 // pred_check_branch
      %124 = sbr.rel (%p122) target = $region25
    $region24: #{_linear_layer_impl.1} parent=1 // pred_region
      %v125 = vld [vmem:[#allocation5] sm:$0xff]
      %v126 = vadd.f32 %v125, %v113
      %127 = vst [vmem:[#allocation5] sm:$0xff] %v126
    $region25: #{_linear_layer_impl.1} parent=1 // pred_fallthru
      _
    // Predicated region
    $region26: #{_linear_layer_impl.1} parent=1 // pred_check
      %p128 = pneg %p116
    $region27: #{_linear_layer_impl.1} parent=1 // pred_check_branch
      %130 = sbr.rel (%p128) target = $region29
    $region28: #{_linear_layer_impl.1} parent=1 // pred_region
      %v131 = vld [vmem:[#allocation5] sm:$0xff]
      %v132 = vld [vmem:[%s2] sm:$0x1]
      %v134 = vlaneseq
      %v135 = vshrl.u32 %v134, 7
      %v136 = vsub.s32 0, %v135
      %v137 = vrot.slane %v132, %v136
      %v139 = vadd.f32 %v131, %v137
      %v140 = vmax.f32 %v139, 0.0
      %141 = vst [vmem:[#allocation5] sm:$0xff] %v140
    $region29: #{_linear_layer_impl.1} parent=1 // pred_fallthru
      _
    // Predicated region
    $region30: #{_linear_layer_impl.1} parent=1 // pred_check
      _
    $region31: #{_linear_layer_impl.1} parent=1 // pred_check_branch
      %143 = sbr.rel (0) target = $region33
    $region32: #{_linear_layer_impl.1} parent=1 // pred_region
      %s145 = ssub.s32 128, 128
      %146 = vsyncadd [#allocation4], %s145
      %s148 = sshll.u32 [#allocation5], 4
      %s149 = int_to_ptr.vmem [resolvable:$true] %s148
      %151 = dma.vmem_to_hbm [thread:$0]  %s149, 128, %s3, [#allocation4]
    $region33: #{_linear_layer_impl.1} parent=1 // pred_fallthru
      _
    // Predicated region
    $region34: #{_linear_layer_impl.1} parent=1 // pred_check
      _
    $region35: #{_linear_layer_impl.1} parent=1 // pred_check_branch
      %153 = sbr.rel (0) target = $region37
    $region36: #{_linear_layer_impl.1} parent=1 // pred_region
      %154 = dma.done [#allocation4], 128
    $region37: #{_linear_layer_impl.1} parent=1 // pred_fallthru
      _
    %155 = vsyncpa [#allocation3], 1
    %156 = vsyncpa [#allocation4], 1

</llo_original>
